<compile_context>
chip_gen: v7x
topology: tpu7x:2x2x1
jax: 0.10.0
libtpu: 0.0.40
codegen_flags: <defaults>
</compile_context>

<pallas_src>
import jax
import jax.numpy as jnp
from jax.experimental import pallas as pl
from jax.experimental.pallas import tpu as pltpu

LN_EPS = 1e-5  # torch.nn.LayerNorm default


def _make_patch_merging_kernel(c2, fuse_k):
    """c2 = 2*C (per-half channel count). fuse_k: single K=4C matmul."""

    def kernel(x_ref, w_ref, bias_ref, o_ref):
        # x_ref:    (ts, 2, Wh, 2C)  strips of the reshaped input
        # w_ref:    (4C, Dout)       bf16, gamma-folded, channel-permuted
        # bias_ref: (1,  Dout)       f32, beta @ W
        # o_ref:    (ts, Wh, Dout)
        ts, _, wh, _ = x_ref.shape
        n = ts * wh
        dout = o_ref.shape[-1]
        inv_4c = 1.0 / (2.0 * c2)

        # Slice the two halves straight off the block (no full-block f32 copy).
        t = x_ref[:, 0].reshape(n, c2).astype(jnp.float32)   # [x0 | x2]
        u = x_ref[:, 1].reshape(n, c2).astype(jnp.float32)   # [x1 | x3]

        # LayerNorm statistics over the (virtual) concatenated 4C vector.
        mean = (jnp.sum(t, axis=-1, keepdims=True)
                + jnp.sum(u, axis=-1, keepdims=True)) * inv_4c
        tc = t - mean
        uc = u - mean
        var = (jnp.sum(tc * tc, axis=-1, keepdims=True)
               + jnp.sum(uc * uc, axis=-1, keepdims=True)) * inv_4c
        rstd = jax.lax.rsqrt(var + LN_EPS)

        # gamma folded into the weights, beta folded into the bias, and the
        # per-token 1/std applied after the matmul.
        if fuse_k:
            xc = jnp.concatenate(
                [tc.astype(jnp.bfloat16), uc.astype(jnp.bfloat16)], axis=-1)
            acc = jnp.dot(xc, w_ref[...], preferred_element_type=jnp.float32)
        else:
            acc = jnp.dot(tc.astype(jnp.bfloat16), w_ref[:c2, :],
                          preferred_element_type=jnp.float32)
            acc = acc + jnp.dot(uc.astype(jnp.bfloat16), w_ref[c2:, :],
                                preferred_element_type=jnp.float32)

        out = acc * rstd + bias_ref[...]
        o_ref[...] = out.reshape(ts, wh, dout).astype(o_ref.dtype)

    return kernel


def _vmem_capacity_bytes():
    """Per-TensorCore VMEM capacity; conservative fallback if unavailable."""
    try:
        info = pltpu.get_tpu_info()
        cap = getattr(info, "vmem_capacity_bytes", None)
        if cap:
            return int(cap)
    except Exception:
        pass
    return 64 * 1024 * 1024   # conservative: v7x has 64 MiB per TensorCore


def _choose_strip_block(S, Wh, target_tokens, budget, est_fn, min_steps):
    """Largest divisor of S whose tile fits both the token target and the
    VMEM budget (including in-kernel temporaries).  Prefers tiles whose
    row count is a multiple of 8 (MXU M / sublane alignment for Wh=7/14/28),
    and, on multi-core parts, a grid of >= min_steps so double-buffering and
    megacore splitting both have work."""
    divisors = [d for d in range(1, S + 1) if S % d == 0]
    ok = [d for d in divisors if d * Wh <= target_tokens and est_fn(d) <= budget]
    if not ok:
        ok = [d for d in divisors if est_fn(d) <= budget] or [1]
    aligned = [d for d in ok if (d * Wh) % 8 == 0]
    pool = aligned if aligned else ok
    best = max(pool)
    if min_steps > 1:
        cand = [d for d in pool if S // d >= min_steps]
        if cand:
            best = max(cand)
    return best


def patch_merging_forward(x, input_resolution, gamma, beta, weight_t,
                          *, target_tokens_per_block=None):
    """x: (B, H*W, C).  weight_t: (4C, Dout) == PyTorch reduction.weight.T.
    gamma/beta: (4C,) LayerNorm affine.  Returns (B, H*W//4, Dout) in x.dtype."""
    H, W = input_resolution
    B, L, C = x.shape
    assert L == H * W, "input feature has wrong size"
    assert H % 2 == 0 and W % 2 == 0, f"x size ({H}*{W}) are not even."
    Wh = W // 2
    S = B * (H // 2)
    C2 = 2 * C
    C4 = 4 * C
    Dout = weight_t.shape[1]
    assert weight_t.shape[0] == C4

    # Pure row-major reshape -> no HBM copy of the activations.
    x_view = x.reshape(S, 2, Wh, C2)

    # Our natural per-token channel order is [x0, x2, x1, x3]; PyTorch uses
    # [x0, x1, x2, x3].  Permute weight rows / LN gamma offline.
    perm = jnp.concatenate([jnp.arange(0, C), jnp.arange(2 * C, 3 * C),
                            jnp.arange(C, 2 * C), jnp.arange(3 * C, 4 * C)])
    wg = (weight_t[perm, :].astype(jnp.float32)
          * gamma[perm].astype(jnp.float32)[:, None]).astype(jnp.bfloat16)
    bias = beta[None, :].astype(jnp.float32) @ weight_t.astype(jnp.float32)

    # Single K=4C matmul only when 2C is lane-aligned (Swin stages C >= 192);
    # at small C the kernel is HBM-bound and the split costs nothing extra.
    fuse_k = (C2 % 128 == 0)

    # --- generation-aware VMEM / tile budgeting --------------------------
    vmem_cap = _vmem_capacity_bytes()
    small_vmem = vmem_cap <= 96 * 1024 * 1024        # v7x-like: 64 MiB / TC
    budget = int(0.70 * vmem_cap)                    # ~45 MiB v7x, ~90 MiB v5e/v6e

    if target_tokens_per_block is None:
        if small_vmem:
            target_tokens_per_block = 1024 if C >= 512 else 2048
        else:
            # 128-MiB parts (v5e/v6e): kernel is HBM-bound for C <= 384, so
            # take much larger tiles (fewer, longer DMAs; ~0.35 us/step saved).
            if C <= 128:
                target_tokens_per_block = 8192
            elif C <= 384:
                target_tokens_per_block = 4096
            else:
                target_tokens_per_block = 2048

    isz_x = x.dtype.itemsize
    isz_o = isz_x                                     # output dtype follows input

    def est_vmem(ts):
        n = ts * Wh
        io = 2 * (n * C4 * isz_x)                     # x block, double-buffered
        io += 2 * (n * Dout * isz_o)                  # out block, double-buffered
        io += 2 * (C4 * Dout * 2 + Dout * 4)          # bf16 weight + f32 bias (x2 buffers)
        tmp = 2 * n * C4 * 4                          # t/u and tc/uc f32 halves
        tmp += n * C4 * 2 * (2 if fuse_k else 1)      # bf16 matmul operand(s)/concat
        tmp += 2 * n * Dout * 4                       # f32 acc + scaled/biased result
        return io + tmp

    # On v7x-like parts keep >= 4 grid steps (>= 2 per TensorCore) so the
    # parallel axis splits across cores AND each core still pipelines DMAs.
    # On single-core parts don't shrink the tile just to grow the grid.
    min_steps = 4 if small_vmem else 1
    ts = _choose_strip_block(S, Wh, target_tokens_per_block, budget, est_vmem,
                             min_steps)
    grid = (S // ts,)

    # Always set an explicit scoped-VMEM limit (v5e default is only 16 MiB),
    # capped at 75% of physical per-core VMEM (<= 48 MiB on v7x).
    vmem_limit = int(min(max(int(est_vmem(ts) * 1.25), 32 * 1024 * 1024),
                         int(0.75 * vmem_cap)))

    n_tokens = S * Wh
    cost = pl.CostEstimate(
        flops=2 * n_tokens * C4 * Dout,
        transcendentals=n_tokens,
        bytes_accessed=(x.size * isz_x
                        + C4 * Dout * 2 + Dout * 4
                        + n_tokens * Dout * isz_o),
    )

    # NOTE: the constant-index weight/bias blocks are counted double-buffered
    # in est_vmem above; single-buffering them (pl.Buffered(1)) is a further
    # VMEM refinement left out to keep the pipeline configuration default.
    kernel = _make_patch_merging_kernel(C2, fuse_k)

    out = pl.pallas_call(
        kernel,
        out_shape=jax.ShapeDtypeStruct((S, Wh, Dout), x.dtype),
        grid_spec=pltpu.PrefetchScalarGridSpec(
            num_scalar_prefetch=0,
            grid=grid,
            in_specs=[
                pl.BlockSpec((ts, 2, Wh, C2), lambda i: (i, 0, 0, 0)),
                pl.BlockSpec((C4, Dout), lambda i: (0, 0)),
                pl.BlockSpec((1, Dout), lambda i: (0, 0)),
            ],
            out_specs=pl.BlockSpec((ts, Wh, Dout), lambda i: (i, 0, 0)),
        ),
        compiler_params=pltpu.CompilerParams(
            dimension_semantics=("parallel",),
            vmem_limit_bytes=vmem_limit),
        cost_estimate=cost,
    )(x_view, wg, bias)

    return out.reshape(B, (H // 2) * Wh, Dout)


def reference_forward(x, input_resolution, gamma, beta, weight_t):
    H, W = input_resolution
    B, L, C = x.shape
    xv = x.reshape(B, H, W, C)
    x0 = xv[:, 0::2, 0::2, :]
    x1 = xv[:, 1::2, 0::2, :]
    x2 = xv[:, 0::2, 1::2, :]
    x3 = xv[:, 1::2, 1::2, :]
    xm = jnp.concatenate([x0, x1, x2, x3], axis=-1).reshape(B, -1, 4 * C)
    mean = jnp.mean(xm, axis=-1, keepdims=True)
    var = jnp.mean((xm - mean) ** 2, axis=-1, keepdims=True)
    xn = (xm - mean) / jnp.sqrt(var + LN_EPS)
    y = xn * gamma + beta
    return jnp.einsum("blc,cd->bld", y, weight_t)


if __name__ == "__main__":
    # Module config: input_resolution=(16,16), dim=4 -> output_dim = 2*dim = 8
    B, H, W, dim = 2, 16, 16, 4
    output_dim = 2 * dim
    C4 = 4 * dim

    key = jax.random.PRNGKey(0)
    kx, kw, kg, kb = jax.random.split(key, 4)

    x = jax.random.normal(kx, (B, H * W, dim), dtype=jnp.float32)
    # PyTorch params: reduction.weight (out, 4*dim) -> pre-transposed (4*dim, out)
    w_torch = 0.05 * jax.random.normal(kw, (output_dim, C4), dtype=jnp.float32)
    weight_t = w_torch.T
    gamma = 1.0 + 0.1 * jax.random.normal(kg, (C4,), dtype=jnp.float32)
    beta = 0.1 * jax.random.normal(kb, (C4,), dtype=jnp.float32)

    out = patch_merging_forward(x, (H, W), gamma, beta, weight_t)
    out = jax.block_until_ready(out)

    ref = reference_forward(x, (H, W), gamma, beta, weight_t)
    assert out.shape == (B, (H // 2) * (W // 2), output_dim), out.shape
    max_err = float(jnp.max(jnp.abs(out - ref)))
    # bf16 MXU operands (f32 accumulation) loosen the tolerance vs pure-f32.
    assert max_err < 2e-2, f"mismatch vs reference: max abs err {max_err}"

    # bf16 activation path (model running in bf16): bf16 in -> bf16 out,
    # halving input/output HBM traffic while LN stats/accum stay f32.
    out_bf16 = patch_merging_forward(x.astype(jnp.bfloat16), (H, W),
                                     gamma, beta, weight_t)
    out_bf16 = jax.block_until_ready(out_bf16)
    assert out_bf16.dtype == jnp.bfloat16
    err_bf16 = float(jnp.max(jnp.abs(out_bf16.astype(jnp.float32) - ref)))
    assert err_bf16 < 1.5e-1, f"bf16 path mismatch: max abs err {err_bf16}"

    print("KERNEL_OK")
</pallas_src>

<mosaic_0001>
module attributes {stable_mosaic.version = 11 : i64} {
  func.func @kernel(%arg0: i32, %arg1: memref<4x2x8x8xf32, #tpu.memory_space<vmem>>, %arg2: memref<16x8xbf16, #tpu.memory_space<vmem>>, %arg3: memref<1x8xf32, #tpu.memory_space<vmem>>, %arg4: memref<4x8x8xf32, #tpu.memory_space<vmem>>) attributes {dimension_semantics = [#tpu.dimension_semantics<parallel>], iteration_bounds = array<i64: 4>, scalar_prefetch = 0 : i64, scratch_operands = 0 : i64, tpu.core_type = #tpu.core_type<tc>, window_params = [{transform_indices = @transform_0, window_bounds = array<i64: 4, 2, 8, 8>}, {pipeline_mode = #tpu.pipeline_mode<synchronous>, transform_indices = @transform_1, window_bounds = array<i64: 16, 8>}, {pipeline_mode = #tpu.pipeline_mode<synchronous>, transform_indices = @transform_2, window_bounds = array<i64: 1, 8>}, {transform_indices = @transform_3, window_bounds = array<i64: 4, 8, 8>}]} {
    %c0 = arith.constant 0 : index
    %c0_0 = arith.constant 0 : index
    %c0_1 = arith.constant 0 : index
    %c0_2 = arith.constant 0 : index
    %0 = vector.load %arg1[%c0, %c0_0, %c0_1, %c0_2] : memref<4x2x8x8xf32, #tpu.memory_space<vmem>>, vector<4x1x8x8xf32>
    %1 = vector.shape_cast %0 : vector<4x1x8x8xf32> to vector<4x8x8xf32>
    %2 = vector.shape_cast %1 : vector<4x8x8xf32> to vector<32x8xf32>
    %c0_3 = arith.constant 0 : index
    %c1 = arith.constant 1 : index
    %c0_4 = arith.constant 0 : index
    %c0_5 = arith.constant 0 : index
    %3 = vector.load %arg1[%c0_3, %c1, %c0_4, %c0_5] : memref<4x2x8x8xf32, #tpu.memory_space<vmem>>, vector<4x1x8x8xf32>
    %4 = vector.shape_cast %3 : vector<4x1x8x8xf32> to vector<4x8x8xf32>
    %5 = vector.shape_cast %4 : vector<4x8x8xf32> to vector<32x8xf32>
    %cst = arith.constant dense<0.000000e+00> : vector<32xf32>
    %6 = vector.multi_reduction <add>, %2, %cst [1] : vector<32x8xf32> to vector<32xf32>
    %7 = vector.shape_cast %6 : vector<32xf32> to vector<32x1xf32>
    %cst_6 = arith.constant dense<0.000000e+00> : vector<32xf32>
    %8 = vector.multi_reduction <add>, %5, %cst_6 [1] : vector<32x8xf32> to vector<32xf32>
    %9 = vector.shape_cast %8 : vector<32xf32> to vector<32x1xf32>
    %10 = arith.addf %7, %9 : vector<32x1xf32>
    %cst_7 = arith.constant 6.250000e-02 : f32
    %11 = vector.broadcast %cst_7 : f32 to vector<32x1xf32>
    %12 = arith.mulf %10, %11 : vector<32x1xf32>
    %13 = vector.broadcast %12 : vector<32x1xf32> to vector<32x8xf32>
    %14 = arith.subf %2, %13 : vector<32x8xf32>
    %15 = vector.broadcast %12 : vector<32x1xf32> to vector<32x8xf32>
    %16 = arith.subf %5, %15 : vector<32x8xf32>
    %17 = arith.mulf %14, %14 : vector<32x8xf32>
    %cst_8 = arith.constant dense<0.000000e+00> : vector<32xf32>
    %18 = vector.multi_reduction <add>, %17, %cst_8 [1] : vector<32x8xf32> to vector<32xf32>
    %19 = vector.shape_cast %18 : vector<32xf32> to vector<32x1xf32>
    %20 = arith.mulf %16, %16 : vector<32x8xf32>
    %cst_9 = arith.constant dense<0.000000e+00> : vector<32xf32>
    %21 = vector.multi_reduction <add>, %20, %cst_9 [1] : vector<32x8xf32> to vector<32xf32>
    %22 = vector.shape_cast %21 : vector<32xf32> to vector<32x1xf32>
    %23 = arith.addf %19, %22 : vector<32x1xf32>
    %cst_10 = arith.constant 6.250000e-02 : f32
    %24 = vector.broadcast %cst_10 : f32 to vector<32x1xf32>
    %25 = arith.mulf %23, %24 : vector<32x1xf32>
    %cst_11 = arith.constant 9.99999974E-6 : f32
    %26 = vector.broadcast %cst_11 : f32 to vector<32x1xf32>
    %27 = arith.addf %25, %26 : vector<32x1xf32>
    %28 = math.rsqrt %27 : vector<32x1xf32>
    %29 = arith.truncf %14 : vector<32x8xf32> to vector<32x8xbf16>
    %c0_12 = arith.constant 0 : index
    %c0_13 = arith.constant 0 : index
    %30 = vector.load %arg2[%c0_12, %c0_13] : memref<16x8xbf16, #tpu.memory_space<vmem>>, vector<8x8xbf16>
    %cst_14 = arith.constant dense<0.000000e+00> : vector<32x8xf32>
    %31 = tpu.matmul %29, %30, %cst_14 {dimension_numbers = #tpu.dot_dimension_numbers<[1], [0], [0], [1], [0, 0, 1, 1], [], []>} : vector<32x8xbf16>, vector<8x8xbf16>, vector<32x8xf32> -> vector<32x8xf32>
    %32 = arith.truncf %16 : vector<32x8xf32> to vector<32x8xbf16>
    %c8 = arith.constant 8 : index
    %c0_15 = arith.constant 0 : index
    %33 = vector.load %arg2[%c8, %c0_15] : memref<16x8xbf16, #tpu.memory_space<vmem>>, vector<8x8xbf16>
    %cst_16 = arith.constant dense<0.000000e+00> : vector<32x8xf32>
    %34 = tpu.matmul %32, %33, %cst_16 {dimension_numbers = #tpu.dot_dimension_numbers<[1], [0], [0], [1], [0, 0, 1, 1], [], []>} : vector<32x8xbf16>, vector<8x8xbf16>, vector<32x8xf32> -> vector<32x8xf32>
    %35 = arith.addf %31, %34 : vector<32x8xf32>
    %36 = vector.broadcast %28 : vector<32x1xf32> to vector<32x8xf32>
    %37 = arith.mulf %35, %36 : vector<32x8xf32>
    %c0_17 = arith.constant 0 : index
    %c0_18 = arith.constant 0 : index
    %38 = vector.load %arg3[%c0_17, %c0_18] : memref<1x8xf32, #tpu.memory_space<vmem>>, vector<1x8xf32>
    %39 = vector.broadcast %38 : vector<1x8xf32> to vector<32x8xf32>
    %40 = arith.addf %37, %39 : vector<32x8xf32>
    %41 = vector.shape_cast %40 : vector<32x8xf32> to vector<4x8x8xf32>
    %c0_19 = arith.constant 0 : index
    %c0_20 = arith.constant 0 : index
    %c0_21 = arith.constant 0 : index
    %42 = vector.load %arg4[%c0_19, %c0_20, %c0_21] : memref<4x8x8xf32, #tpu.memory_space<vmem>>, vector<4x8x8xf32>
    tpu.vector_store %arg4[%c0_19, %c0_20, %c0_21], %41 {strides = array<i32>} : memref<4x8x8xf32, #tpu.memory_space<vmem>>, vector<4x8x8xf32>,
    return
  }
  func.func @transform_0(%arg0: i32) -> (i32, i32, i32, i32) {
    %c0_i32 = arith.constant 0 : i32
    %c0_i32_0 = arith.constant 0 : i32
    %c0_i32_1 = arith.constant 0 : i32
    %c0_i32_2 = arith.constant 0 : i32
    return %arg0, %c0_i32, %c0_i32_0, %c0_i32_1 : i32, i32, i32, i32
  }
  func.func @transform_1(%arg0: i32) -> (i32, i32) {
    %c0_i32 = arith.constant 0 : i32
    %c0_i32_0 = arith.constant 0 : i32
    %c0_i32_1 = arith.constant 0 : i32
    return %c0_i32, %c0_i32_0 : i32, i32
  }
  func.func @transform_2(%arg0: i32) -> (i32, i32) {
    %c0_i32 = arith.constant 0 : i32
    %c0_i32_0 = arith.constant 0 : i32
    %c0_i32_1 = arith.constant 0 : i32
    return %c0_i32, %c0_i32_0 : i32, i32
  }
  func.func @transform_3(%arg0: i32) -> (i32, i32, i32) {
    %c0_i32 = arith.constant 0 : i32
    %c0_i32_0 = arith.constant 0 : i32
    %c0_i32_1 = arith.constant 0 : i32
    return %arg0, %c0_i32, %c0_i32_0 : i32, i32, i32
  }
}

</mosaic_0001>

<llo_original>
// kernel: tpu_custom_call.1
$region0: #{tpu_custom_call.1}
  #allocation0 [shape = 'u32[]', space=smem, size = 0x4, offset = 0x4, fixed_abs, tag = 'smem constant byte address 0x4 - core index']
  #allocation1 [shape = 'u32[144,128]{1,0:T(1,128)}', space=vmem, size = 0x12000, scoped, tag = 'internal scratch']
  %s0 = inlined_call_operand.vmem [shape: f32[16,2,8,8], index: 0, kind: input, shape index: {}]
  %s1 = inlined_call_operand.vmem [shape: bf16[16,8], index: 1, kind: input, shape index: {}]
  %s2 = inlined_call_operand.vmem [shape: f32[1,8], index: 2, kind: input, shape index: {}]
  %s3 = inlined_call_operand.vmem [shape: f32[16,8,8], index: 3, kind: output, shape index: {}]
  %s4 = sld [smem:[#allocation0]]
  $region45: #{tpu_custom_call.1} parent=0
    _
  %s6 = ssub.s32 1, %s4
  %s7 = scalar_select 0, %s6, %s4
  loop: start=0, step=1, limit=6
  $region2: #{tpu_custom_call.1} parent=0 // loop_pre_header
    _
  $region3: #{tpu_custom_call.1} parent=0 // loop_header
    %s9 = sphi 0, %s13
    %p10 = scmp.ge.s32.totalorder %s9, 6
    %s19 = sphi 0, %s21
    %s22 = sphi 0, %s19
    %s23 = sphi 0, %s22
    %s39 = sphi 0, %s23
    %s43 = sphi 0, %s43
    %s45 = sphi 0, %s43
    %s46 = sphi 0, %s45
    %s60 = sphi 0, %s46
    %s64 = sphi 0, %s64
    %s66 = sphi 0, %s64
    %s67 = sphi 0, %s66
    %s81 = sphi 0, %s67
    %s87 = sphi 0, %s89
    %s90 = sphi 0, %s87
    %s91 = sphi 0, %s90
    %s107 = sphi 0, %s91
  $region4: #{tpu_custom_call.1} parent=0 // loop_header_branch
    %12 = sbr.rel (%p10) target = $region8
  $region5: #{tpu_custom_call.1} parent=0 // loop_body
    %s14 = ssub.s32 %s9, 1
    %s15 = ssub.s32 %s9, 2
    %s16 = sadd.s32 %s9, 1
    %s17 = ssub.s32 %s9, %s16
    %p18 = scmp.eq.s32.totalorder %s17, 0
    %s20 = sadd.s32 %s19, 1
    %s21 = scalar_select %p18, %s19, %s20
    %p24 = pneg %p18
    %p25 = scmp.eq.s32.totalorder %s9, 3
    %p26 = por %p24, %p25
    %p27 = scmp.ne.s32.totalorder %s19, %s22
    %p28 = scmp.eq.s32.totalorder %s9, 0
    %p29 = por %p27, %p28
    %p30 = scmp.ne.s32.totalorder %s19, %s22
    %p31 = scmp.eq.s32.totalorder %s14, 3
    %p32 = por %p30, %p31
    %p33 = scmp.ne.s32.totalorder %s22, %s23
    %p34 = scmp.eq.s32.totalorder %s14, 0
    %p35 = por %p33, %p34
    %p36 = scmp.ne.s32.totalorder %s22, %s23
    %p37 = scmp.eq.s32.totalorder %s15, 3
    %p38 = por %p36, %p37
    %p40 = scmp.ne.s32.totalorder %s23, %s39
    %p41 = scmp.eq.s32.totalorder %s15, 0
    %p42 = por %p40, %p41
    %s44 = sadd.s32 %s43, 1
    %p47 = scmp.eq.s32.totalorder %s9, 3
    %p48 = scmp.ne.s32.totalorder %s43, %s45
    %p49 = scmp.eq.s32.totalorder %s9, 0
    %p50 = por %p48, %p49
    %p51 = scmp.ne.s32.totalorder %s43, %s45
    %p52 = scmp.eq.s32.totalorder %s14, 3
    %p53 = por %p51, %p52
    %p54 = scmp.ne.s32.totalorder %s45, %s46
    %p55 = scmp.eq.s32.totalorder %s14, 0
    %p56 = por %p54, %p55
    %p57 = scmp.ne.s32.totalorder %s45, %s46
    %p58 = scmp.eq.s32.totalorder %s15, 3
    %p59 = por %p57, %p58
    %p61 = scmp.ne.s32.totalorder %s46, %s60
    %p62 = scmp.eq.s32.totalorder %s15, 0
    %p63 = por %p61, %p62
    %s65 = sadd.s32 %s64, 1
    %p68 = scmp.eq.s32.totalorder %s9, 3
    %p69 = scmp.ne.s32.totalorder %s64, %s66
    %p70 = scmp.eq.s32.totalorder %s9, 0
    %p71 = por %p69, %p70
    %p72 = scmp.ne.s32.totalorder %s64, %s66
    %p73 = scmp.eq.s32.totalorder %s14, 3
    %p74 = por %p72, %p73
    %p75 = scmp.ne.s32.totalorder %s66, %s67
    %p76 = scmp.eq.s32.totalorder %s14, 0
    %p77 = por %p75, %p76
    %p78 = scmp.ne.s32.totalorder %s66, %s67
    %p79 = scmp.eq.s32.totalorder %s15, 3
    %p80 = por %p78, %p79
    %p82 = scmp.ne.s32.totalorder %s67, %s81
    %p83 = scmp.eq.s32.totalorder %s15, 0
    %p84 = por %p82, %p83
    %s85 = ssub.s32 %s9, %s16
    %p86 = scmp.eq.s32.totalorder %s85, 0
    %s88 = sadd.s32 %s87, 1
    %s89 = scalar_select %p86, %s87, %s88
    %p92 = pneg %p86
    %p93 = scmp.eq.s32.totalorder %s9, 3
    %p94 = por %p92, %p93
    %p95 = scmp.ne.s32.totalorder %s87, %s90
    %p96 = scmp.eq.s32.totalorder %s9, 0
    %p97 = por %p95, %p96
    %p98 = scmp.ne.s32.totalorder %s87, %s90
    %p99 = scmp.eq.s32.totalorder %s14, 3
    %p100 = por %p98, %p99
    %p101 = scmp.ne.s32.totalorder %s90, %s91
    %p102 = scmp.eq.s32.totalorder %s14, 0
    %p103 = por %p101, %p102
    %p104 = scmp.ne.s32.totalorder %s90, %s91
    %p105 = scmp.eq.s32.totalorder %s15, 3
    %p106 = por %p104, %p105
    %p108 = scmp.ne.s32.totalorder %s91, %s107
    %p109 = scmp.eq.s32.totalorder %s15, 0
    %p110 = por %p108, %p109
    %p111 = scmp.le.s32.totalorder 1, %s9
    %p112 = scmp.lt.s32.totalorder %s9, 5
    %p113 = pnand %p111, %p112
    %p114 = pneg %p113
    // Predicated region
    $region9: #{tpu_custom_call.1} parent=5 // pred_check
      _
    $region10: #{tpu_custom_call.1} parent=5 // pred_check_branch
      %116 = sbr.rel (%p113) target = $region12
    $region11: #{tpu_custom_call.1} parent=5 // pred_region
      %s117 = ssub.s32 %s9, 1
      // Predicated region
      $region13: #{tpu_custom_call.1} parent=11 // pred_check
        %p118 = pneg %p56
      $region14: #{tpu_custom_call.1} parent=11 // pred_check_branch
        %120 = sbr.rel (%p118) target = $region16
      $region15: #{tpu_custom_call.1} parent=11 // pred_region
        _
      $region16: #{tpu_custom_call.1} parent=11 // pred_fallthru
        _
      // Predicated region
      $region17: #{tpu_custom_call.1} parent=11 // pred_check
        %p121 = pneg %p77
      $region18: #{tpu_custom_call.1} parent=11 // pred_check_branch
        %123 = sbr.rel (%p121) target = $region20
      $region19: #{tpu_custom_call.1} parent=11 // pred_region
        _
      $region20: #{tpu_custom_call.1} parent=11 // pred_fallthru
        _
    $region12: #{tpu_custom_call.1} parent=5 // pred_fallthru
      _
    %p124 = scmp.lt.s32.totalorder %s9, 4
    // Predicated region
    $region21: #{tpu_custom_call.1} parent=5 // pred_check
      %p125 = pneg %p124
    $region22: #{tpu_custom_call.1} parent=5 // pred_check_branch
      %127 = sbr.rel (%p125) target = $region24
    $region23: #{tpu_custom_call.1} parent=5 // pred_region
      // Predicated region
      $region25: #{tpu_custom_call.1} parent=23 // pred_check
        %p128 = pneg %p29
      $region26: #{tpu_custom_call.1} parent=23 // pred_check_branch
        %130 = sbr.rel (%p128) target = $region28
      $region27: #{tpu_custom_call.1} parent=23 // pred_region
        %s131 = smul.u32 4, %s9
        %p132 = scmp.lt.s32.totalorder %s131, 15
        %s133 = scalar_select %p132, %s131, 15
        %s134 = smul.addr %s133, 2
        %s135 = smul.addr %s134, 8
        %s136 = scalar_lea.vmem %s0, %s135
        %s137 = smul.u32 4, %s9
      $region28: #{tpu_custom_call.1} parent=23 // pred_fallthru
        _
    $region24: #{tpu_custom_call.1} parent=5 // pred_fallthru
      _
    %p138 = scmp.le.s32.totalorder 1, %s9
    %p139 = scmp.lt.s32.totalorder %s9, 5
    %p140 = pnand %p138, %p139
    %p141 = pneg %p140
    // Predicated region
    $region29: #{tpu_custom_call.1} parent=5 // pred_check
      _
    $region30: #{tpu_custom_call.1} parent=5 // pred_check_branch
      %143 = sbr.rel (%p140) target = $region32
    $region31: #{tpu_custom_call.1} parent=5 // pred_region
      %s144 = ssub.s32 %s9, 1
      %s145 = smul.u32 4, %s14
      %p146 = scmp.lt.s32.totalorder %s145, 15
      %s147 = scalar_select %p146, %s145, 15
      %s148 = smul.addr %s147, 2
      %s149 = smul.addr %s148, 8
      %s150 = scalar_lea.vmem %s0, %s149
      %p151 = pneg %p35
      %p152 = pneg %p32
      %p153 = pneg %p56
      %p154 = pneg %p53
      %p155 = pneg %p77
      %p156 = pneg %p74
      %p157 = pneg %p103
      %p158 = pneg %p100
      %s159 = smul.u32 4, %s14
      %p160 = scmp.lt.s32.totalorder %s159, 15
      %s161 = scalar_select %p160, %s159, 15
      %s162 = smul.addr %s161, 8
      %s163 = scalar_lea.vmem %s3, %s162
      %s164 = smul.u32 4, %s14
      %p165 = scmp.lt.s32.totalorder %s164, 15
      %s166 = scalar_select %p165, %s164, 15
      %s167 = smul.addr %s166, 2
      %s168 = smul.addr %s167, 8
      %s169 = scalar_lea.vmem %s0, %s168
      %s170 = smul.u32 4, %s14
      %s171 = smul.u32 4, %s14
      %p172 = scmp.lt.s32.totalorder %s171, 15
      %s173 = scalar_select %p172, %s171, 15
      %s174 = smul.addr %s173, 8
      %s175 = scalar_lea.vmem %s3, %s174
      %s176 = smul.u32 4, %s14
      %v178 = vld [vmem:[%s169] sm:$0xff]
      %v179 = vld [vmem:[%s169 + $0x10] sm:$0xff]
      %v180 = vld [vmem:[%s169 + $0x20] sm:$0xff]
      %v181 = vld [vmem:[%s169 + $0x30] sm:$0xff]
      %s182 = scalar_lea.vmem %s169, 8
      %v183 = vld [vmem:[%s182] sm:$0xff]
      %v184 = vld [vmem:[%s182 + $0x10] sm:$0xff]
      %v185 = vld [vmem:[%s182 + $0x20] sm:$0xff]
      %v186 = vld [vmem:[%s182 + $0x30] sm:$0xff]
      %vm187 = vcmask 64512
      %v188 = vsel %vm187, %v178, 0.0
      %189 = vadd.xlane.f32.xlu0 %v188
      %v190 = vpop.xlane.xlu0 %189
      %v191 = vsel %vm187, %v179, 0.0
      %192 = vadd.xlane.f32.xlu0 %v191
      %v193 = vpop.xlane.xlu0 %192
      %v194 = vsel %vm187, %v180, 0.0
      %195 = vadd.xlane.f32.xlu0 %v194
      %v196 = vpop.xlane.xlu0 %195
      %v197 = vsel %vm187, %v181, 0.0
      %198 = vadd.xlane.f32.xlu0 %v197
      %v199 = vpop.xlane.xlu0 %198
      %v200 = vsel %vm187, %v183, 0.0
      %201 = vadd.xlane.f32.xlu0 %v200
      %v202 = vpop.xlane.xlu0 %201
      %v203 = vsel %vm187, %v184, 0.0
      %204 = vadd.xlane.f32.xlu0 %v203
      %v205 = vpop.xlane.xlu0 %204
      %v206 = vsel %vm187, %v185, 0.0
      %207 = vadd.xlane.f32.xlu0 %v206
      %v208 = vpop.xlane.xlu0 %207
      %v209 = vsel %vm187, %v186, 0.0
      %210 = vadd.xlane.f32.xlu0 %v209
      %v211 = vpop.xlane.xlu0 %210
      %v212 = vadd.f32 %v190, %v202
      %v213 = vadd.f32 %v193, %v205
      %v214 = vadd.f32 %v196, %v208
      %v215 = vadd.f32 %v199, %v211
      %v216 = vmul.f32 %v212, 0.0625
      %v217 = vmul.f32 %v213, 0.0625
      %v218 = vmul.f32 %v214, 0.0625
      %v219 = vmul.f32 %v215, 0.0625
      %v220 = vsub.f32 %v178, %v216
      %v221 = vsub.f32 %v179, %v217
      %v222 = vsub.f32 %v180, %v218
      %v223 = vsub.f32 %v181, %v219
      %v224 = vsub.f32 %v183, %v216
      %v225 = vsub.f32 %v184, %v217
      %v226 = vsub.f32 %v185, %v218
      %v227 = vsub.f32 %v186, %v219
      %v228 = vmul.f32 %v220, %v220
      %v229 = vmul.f32 %v221, %v221
      %v230 = vmul.f32 %v222, %v222
      %v231 = vmul.f32 %v223, %v223
      %v232 = vsel %vm187, %v228, 0.0
      %233 = vadd.xlane.f32.xlu0 %v232
      %v234 = vpop.xlane.xlu0 %233
      %v235 = vsel %vm187, %v229, 0.0
      %236 = vadd.xlane.f32.xlu0 %v235
      %v237 = vpop.xlane.xlu0 %236
      %v238 = vsel %vm187, %v230, 0.0
      %239 = vadd.xlane.f32.xlu0 %v238
      %v240 = vpop.xlane.xlu0 %239
      %v241 = vsel %vm187, %v231, 0.0
      %242 = vadd.xlane.f32.xlu0 %v241
      %v243 = vpop.xlane.xlu0 %242
      %v244 = vmul.f32 %v224, %v224
      %v245 = vmul.f32 %v225, %v225
      %v246 = vmul.f32 %v226, %v226
      %v247 = vmul.f32 %v227, %v227
      %v248 = vsel %vm187, %v244, 0.0
      %249 = vadd.xlane.f32.xlu0 %v248
      %v250 = vpop.xlane.xlu0 %249
      %v251 = vsel %vm187, %v245, 0.0
      %252 = vadd.xlane.f32.xlu0 %v251
      %v253 = vpop.xlane.xlu0 %252
      %v254 = vsel %vm187, %v246, 0.0
      %255 = vadd.xlane.f32.xlu0 %v254
      %v256 = vpop.xlane.xlu0 %255
      %v257 = vsel %vm187, %v247, 0.0
      %258 = vadd.xlane.f32.xlu0 %v257
      %v259 = vpop.xlane.xlu0 %258
      %v260 = vadd.f32 %v234, %v250
      %v261 = vadd.f32 %v237, %v253
      %v262 = vadd.f32 %v240, %v256
      %v263 = vadd.f32 %v243, %v259
      %v264 = vmul.f32 %v260, 0.0625
      %v265 = vmul.f32 %v261, 0.0625
      %v266 = vmul.f32 %v262, 0.0625
      %v267 = vmul.f32 %v263, 0.0625
      %v268 = vadd.f32 %v264, 1e-05
      %v269 = vadd.f32 %v265, 1e-05
      %v270 = vadd.f32 %v266, 1e-05
      %v271 = vadd.f32 %v267, 1e-05
      %v272 = vrsqrt.pop %v268
      %v273 = vrsqrt.pop %v269
      %v274 = vrsqrt.pop %v270
      %v275 = vrsqrt.pop %v271
      %v276 = vpack.c.bf16 %v221, %v220
      %v277 = vpack.c.bf16 %v223, %v222
      %v278 = vld [vmem:[%s1] sm:$0xf]
      %v279 = vpack.c.bf16 %v225, %v224
      %v280 = vpack.c.bf16 %v227, %v226
      %v281 = vld [vmem:[%s1 + $0x4] sm:$0xf]
      %v283 = vsel %vm187, %v279, 0
      %v286 = vsel %vm187, %v280, 0
      %vm288 = vcmask 1043456
      %v290 = vsel %vm288, %v281, 0
      %292 = vmatprep.subr.bf16.mxu0 0
      %293 = vmatpush1.bf16.msra.mxu0 %v290
      %294 = vmatprep.subr.bf16.mxu0 0
      %295 = vmatpush1.bf16.msra.mxu0 0
      %296 = vmatprep.subr.bf16.mxu0 0
      %297 = vmatpush1.bf16.msra.mxu0 0
      %298 = vmatprep.subr.bf16.mxu0 0
      %299 = vmatpush1.bf16.msra.mxu0 0
      %300 = vmatprep.subr.bf16.mxu0 0
      %301 = vmatpush1.bf16.msra.mxu0 0
      %302 = vmatprep.subr.bf16.mxu0 0
      %303 = vmatpush1.bf16.msra.mxu0 0
      %304 = vmatprep.subr.bf16.mxu0 0
      %305 = vmatpush1.bf16.msra.mxu0 0
      %306 = vmatprep.subr.bf16.mxu0 0
      %307 = vmatpush1.bf16.msra.mxu0 0
      %308 = vmatprep.subr.bf16.mxu0 0
      %309 = vmatpush1.bf16.msra.mxu0 0
      %310 = vmatprep.subr.bf16.mxu0 0
      %311 = vmatpush1.bf16.msra.mxu0 0
      %312 = vmatprep.subr.bf16.mxu0 0
      %313 = vmatpush1.bf16.msra.mxu0 0
      %314 = vmatprep.subr.bf16.mxu0 0
      %315 = vmatpush1.bf16.msra.mxu0 0
      %316 = vmatprep.subr.bf16.mxu0 0
      %317 = vmatpush1.bf16.msra.mxu0 0
      %318 = vmatprep.subr.bf16.mxu0 0
      %319 = vmatpush1.bf16.msra.mxu0 0
      %320 = vmatprep.subr.bf16.mxu0 0
      %321 = vmatpush1.bf16.msra.mxu0 0
      %322 = vmatprep.subr.bf16.mxu0 0
      %323 = vmatpush1.bf16.msra.mxu0 0
      %324 = vmatprep.mubr.bf16.mxu0 0
      %325 = vmatmul.mubr.bf16.gmra.mrb[0].mxu0 %v283
      %v326 = vpop.f32.mrb[0].mxu0
      %v327 = vadd.f32 0.0, %v326
      %v328 = vpop.f32.mrb[0].mxu0
      %v329 = vpop.f32.mrb[0].mxu0
      %v330 = vadd.f32 0.0, %v329
      %v331 = vpop.f32.mrb[0].mxu0
      %332 = vmatprep.mubr.bf16.mxu0 0
      %333 = vmatmul.mubr.bf16.gmra.mrb[0].mxu0 %v286
      %v334 = vpop.f32.mrb[0].mxu0
      %v335 = vadd.f32 0.0, %v334
      %v336 = vpop.f32.mrb[0].mxu0
      %v337 = vpop.f32.mrb[0].mxu0
      %v338 = vadd.f32 0.0, %v337
      %v339 = vpop.f32.mrb[0].mxu0
      %340 = vdwg.mxu0
      %v342 = vsel %vm187, %v276, 0
      %v345 = vsel %vm187, %v277, 0
      %v348 = vsel %vm288, %v278, 0
      %350 = vmatprep.subr.bf16.mxu0 0
      %351 = vmatpush1.bf16.msra.mxu0 %v348
      %352 = vmatprep.subr.bf16.mxu0 0
      %353 = vmatpush1.bf16.msra.mxu0 0
      %354 = vmatprep.subr.bf16.mxu0 0
      %355 = vmatpush1.bf16.msra.mxu0 0
      %356 = vmatprep.subr.bf16.mxu0 0
      %357 = vmatpush1.bf16.msra.mxu0 0
      %358 = vmatprep.subr.bf16.mxu0 0
      %359 = vmatpush1.bf16.msra.mxu0 0
      %360 = vmatprep.subr.bf16.mxu0 0
      %361 = vmatpush1.bf16.msra.mxu0 0
      %362 = vmatprep.subr.bf16.mxu0 0
      %363 = vmatpush1.bf16.msra.mxu0 0
      %364 = vmatprep.subr.bf16.mxu0 0
      %365 = vmatpush1.bf16.msra.mxu0 0
      %366 = vmatprep.subr.bf16.mxu0 0
      %367 = vmatpush1.bf16.msra.mxu0 0
      %368 = vmatprep.subr.bf16.mxu0 0
      %369 = vmatpush1.bf16.msra.mxu0 0
      %370 = vmatprep.subr.bf16.mxu0 0
      %371 = vmatpush1.bf16.msra.mxu0 0
      %372 = vmatprep.subr.bf16.mxu0 0
      %373 = vmatpush1.bf16.msra.mxu0 0
      %374 = vmatprep.subr.bf16.mxu0 0
      %375 = vmatpush1.bf16.msra.mxu0 0
      %376 = vmatprep.subr.bf16.mxu0 0
      %377 = vmatpush1.bf16.msra.mxu0 0
      %378 = vmatprep.subr.bf16.mxu0 0
      %379 = vmatpush1.bf16.msra.mxu0 0
      %380 = vmatprep.subr.bf16.mxu0 0
      %381 = vmatpush1.bf16.msra.mxu0 0
      %382 = vmatprep.mubr.bf16.mxu0 0
      %383 = vmatmul.mubr.bf16.gmra.mrb[0].mxu0 %v342
      %v384 = vpop.f32.mrb[0].mxu0
      %v385 = vadd.f32 %v327, %v384
      %v386 = vpop.f32.mrb[0].mxu0
      %v387 = vpop.f32.mrb[0].mxu0
      %v388 = vadd.f32 %v330, %v387
      %v389 = vpop.f32.mrb[0].mxu0
      %390 = vmatprep.mubr.bf16.mxu0 0
      %391 = vmatmul.mubr.bf16.gmra.mrb[0].mxu0 %v345
      %v392 = vpop.f32.mrb[0].mxu0
      %v393 = vadd.f32 %v335, %v392
      %v394 = vpop.f32.mrb[0].mxu0
      %v395 = vpop.f32.mrb[0].mxu0
      %v396 = vadd.f32 %v338, %v395
      %v397 = vpop.f32.mrb[0].mxu0
      %398 = vdwg.mxu0
      %v399 = vmul.f32 %v385, %v272
      %v400 = vmul.f32 %v388, %v273
      %v401 = vmul.f32 %v393, %v274
      %v402 = vmul.f32 %v396, %v275
      %v403 = vld [vmem:[%s2] sm:$0x1]
      %v405 = vlaneseq
      %v406 = vshrl.u32 %v405, 7
      %v407 = vsub.s32 0, %v406
      %v408 = vrot.slane %v403, %v407
      %v410 = vadd.f32 %v399, %v408
      %v411 = vadd.f32 %v400, %v408
      %v412 = vadd.f32 %v401, %v408
      %v413 = vadd.f32 %v402, %v408
      %414 = vst.msk [vmem:[%s175] sm:$0xff] %vm187, %v410
      %415 = vst.msk [vmem:[%s175 + $0x8] sm:$0xff] %vm187, %v411
      %416 = vst.msk [vmem:[%s175 + $0x10] sm:$0xff] %vm187, %v412
      %417 = vst.msk [vmem:[%s175 + $0x18] sm:$0xff] %vm187, %v413
      %s418 = smul.u32 4, %s14
      %p419 = scmp.lt.s32.totalorder %s418, 15
      %s420 = scalar_select %p419, %s418, 15
      %s421 = smul.addr %s420, 8
      %s422 = scalar_lea.vmem %s3, %s421
      // Predicated region
      $region33: #{tpu_custom_call.1} parent=31 // pred_check
        %p423 = pneg %p100
      $region34: #{tpu_custom_call.1} parent=31 // pred_check_branch
        %425 = sbr.rel (%p423) target = $region36
      $region35: #{tpu_custom_call.1} parent=31 // pred_region
        %s426 = smul.u32 4, %s14
      $region36: #{tpu_custom_call.1} parent=31 // pred_fallthru
        _
    $region32: #{tpu_custom_call.1} parent=5 // pred_fallthru
      _
    %p427 = scmp.le.s32.totalorder 2, %s9
    // Predicated region
    $region37: #{tpu_custom_call.1} parent=5 // pred_check
      %p428 = pneg %p427
    $region38: #{tpu_custom_call.1} parent=5 // pred_check_branch
      %430 = sbr.rel (%p428) target = $region40
    $region39: #{tpu_custom_call.1} parent=5 // pred_region
      %s431 = ssub.s32 %s9, 2
      // Predicated region
      $region41: #{tpu_custom_call.1} parent=39 // pred_check
        %p432 = pneg %p106
      $region42: #{tpu_custom_call.1} parent=39 // pred_check_branch
        %434 = sbr.rel (%p432) target = $region44
      $region43: #{tpu_custom_call.1} parent=39 // pred_region
        %s435 = smul.u32 4, %s15
        %p436 = scmp.lt.s32.totalorder %s435, 15
        %s437 = scalar_select %p436, %s435, 15
        %s438 = smul.addr %s437, 8
        %s439 = scalar_lea.vmem %s3, %s438
      $region44: #{tpu_custom_call.1} parent=39 // pred_fallthru
        _
    $region40: #{tpu_custom_call.1} parent=5 // pred_fallthru
      _
  $region6: #{tpu_custom_call.1} parent=0 // loop_footer
    %s13 = sadd.s32 1, %s9
  $region7: #{tpu_custom_call.1} parent=0 // loop_footer_branch
    %8 = sbr.rel target = $region3
  $region8: #{tpu_custom_call.1} parent=0 // loop_exit
    _

</llo_original>
